<compile_context>
chip_gen: v7x
topology: tpu7x:2x2x1
jax: 0.10.0
libtpu: 0.0.40
codegen_flags: <defaults>
</compile_context>

<pallas_src>
import functools

import jax
import jax.numpy as jnp
from jax.experimental import pallas as pl
from jax.experimental.pallas import tpu as pltpu

LANE = 128      # lane width
TR_MAX = 512    # max sublane rows per grid step -> (512, 128) f32 tiles (256 KiB/stream)


def _focal_loss_kernel(x_ref, t_ref, o_ref, *, alpha, gamma, tr,
                       n_valid, block_elems, need_mask):
    i = pl.program_id(0)

    p = x_ref[...]   # (tr, LANE) f32, post-sigmoid probabilities
    t = t_ref[...]   # (tr, LANE) f32 targets

    if need_mask:
        row_ids = jax.lax.broadcasted_iota(jnp.int32, (tr, LANE), 0)
        lane_ids = jax.lax.broadcasted_iota(jnp.int32, (tr, LANE), 1)
        idx = i * block_elems + row_ids * LANE + lane_ids
        valid = idx < n_valid
        # Keep log() finite on padded / overhang elements; zeroed out below.
        p = jnp.where(valid, p, 0.5)
        t = jnp.where(valid, t, 0.0)

    log_p = jnp.log(p)
    log_1mp = jnp.log(1.0 - p)
    if gamma == 2.0:
        omp = 1.0 - p
        omp_pow = omp * omp                  # VPU square instead of pow's exp+log
    else:
        omp_pow = jnp.exp(gamma * log_1mp)   # reuse log(1-p) already computed

    alpha_mask = alpha * t
    # Two-term form, identical to the reference (handles soft labels too).
    loss = -omp_pow * (log_p * t * alpha_mask
                       + log_1mp * (1.0 - t) * (1.0 - alpha_mask))
    if need_mask:
        loss = jnp.where(valid, loss, 0.0)

    # (tr, 128) -> (8, 128) partial: sublane-group adds only (pure VPU, no XLU).
    partial = loss.reshape(tr // 8, 8, LANE).sum(axis=0)
    o_ref[...] = partial[None, :, :]


def focal_loss_sigmoid(inputs, targets, *, alpha=0.25, gamma=2.0, size_average=False):
    """Pallas equivalent of FocalLossSigmoid.forward (returns a scalar)."""
    n_total = int(inputs.size)

    x = inputs.reshape(-1).astype(jnp.float32)
    t = targets.reshape(-1).astype(jnp.float32)

    # Only pad up to a lane multiple (< 128 elements); the pad is masked in-kernel.
    rem = n_total % LANE
    if rem:
        pad = LANE - rem
        x = jnp.concatenate([x, jnp.full((pad,), 0.5, jnp.float32)])
        t = jnp.concatenate([t, jnp.zeros((pad,), jnp.float32)])

    rows = x.shape[0] // LANE
    x2 = x.reshape(rows, LANE)
    t2 = t.reshape(rows, LANE)

    tr = min(TR_MAX, ((rows + 7) // 8) * 8)       # multiple of 8, capped at TR_MAX
    num_blocks = pl.cdiv(rows, tr)                # ragged last block handled in-kernel
    block_elems = tr * LANE
    need_mask = (num_blocks * block_elems) > n_total

    kernel = functools.partial(
        _focal_loss_kernel,
        alpha=float(alpha), gamma=float(gamma), tr=tr,
        n_valid=n_total, block_elems=block_elems, need_mask=need_mask)

    partials = pl.pallas_call(
        kernel,
        out_shape=jax.ShapeDtypeStruct((num_blocks, 8, LANE), jnp.float32),
        grid_spec=pltpu.PrefetchScalarGridSpec(
            num_scalar_prefetch=0,
            grid=(num_blocks,),
            in_specs=[
                pl.BlockSpec((tr, LANE), lambda i: (i, 0)),
                pl.BlockSpec((tr, LANE), lambda i: (i, 0)),
            ],
            out_specs=pl.BlockSpec((1, 8, LANE), lambda i: (i, 0, 0)),
        ),
        compiler_params=pltpu.CompilerParams(
            # Independent per-block partials -> grid can shard across TCs (v7x).
            dimension_semantics=("parallel",),
        ),
    )(x2, t2)

    loss = jnp.sum(partials)   # tiny final reduce in the wrapper
    if size_average:
        loss = loss / jnp.float32(n_total)
    return loss


def _reference(inputs, targets, *, alpha=0.25, gamma=2.0, size_average=False):
    p = inputs.astype(jnp.float32)
    t = targets.astype(jnp.float32)
    alpha_mask = alpha * t
    loss_pos = -1.0 * jnp.power(1.0 - p, gamma) * jnp.log(p) * t * alpha_mask
    loss_neg = -1.0 * jnp.power(1.0 - p, gamma) * jnp.log(1.0 - p) * (1.0 - t) * (1.0 - alpha_mask)
    batch_loss = loss_neg + loss_pos
    return jnp.mean(batch_loss) if size_average else jnp.sum(batch_loss)


if __name__ == "__main__":
    key = jax.random.PRNGKey(0)
    k_in, k_tg = jax.random.split(key)

    # NCHW, small shapes: batch=2, channels=4, spatial=16x16.
    shape = (2, 4, 16, 16)
    # `inputs` are probabilities (post-sigmoid); keep away from 0/1 so log() is finite.
    inputs = jax.random.uniform(k_in, shape, jnp.float32, minval=0.05, maxval=0.95)
    targets = jax.random.bernoulli(k_tg, p=0.3, shape=shape).astype(jnp.float32)

    loss = focal_loss_sigmoid(inputs, targets, alpha=0.25, gamma=2.0, size_average=False)
    loss = jax.block_until_ready(loss)

    ref = _reference(inputs, targets, alpha=0.25, gamma=2.0, size_average=False)
    assert jnp.allclose(loss, ref, rtol=1e-5, atol=1e-3), (loss, ref)

    print("KERNEL_OK")
</pallas_src>

<mosaic_0001>
module attributes {stable_mosaic.version = 11 : i64} {
  func.func @_focal_loss_kernel(%arg0: i32, %arg1: memref<16x128xf32, #tpu.memory_space<vmem>>, %arg2: memref<16x128xf32, #tpu.memory_space<vmem>>, %arg3: memref<1x8x128xf32, #tpu.memory_space<vmem>>) attributes {dimension_semantics = [#tpu.dimension_semantics<parallel>], iteration_bounds = array<i64: 1>, scalar_prefetch = 0 : i64, scratch_operands = 0 : i64, tpu.core_type = #tpu.core_type<tc>, window_params = [{transform_indices = @transform_0, window_bounds = array<i64: 16, 128>}, {transform_indices = @transform_1, window_bounds = array<i64: 16, 128>}, {transform_indices = @transform_2, window_bounds = array<i64: 1, 8, 128>}]} {
    %c0 = arith.constant 0 : index
    %c0_0 = arith.constant 0 : index
    %0 = vector.load %arg1[%c0, %c0_0] : memref<16x128xf32, #tpu.memory_space<vmem>>, vector<16x128xf32>
    %c0_1 = arith.constant 0 : index
    %c0_2 = arith.constant 0 : index
    %1 = vector.load %arg2[%c0_1, %c0_2] : memref<16x128xf32, #tpu.memory_space<vmem>>, vector<16x128xf32>
    %2 = math.log %0 : vector<16x128xf32>
    %cst = arith.constant 1.000000e+00 : f32
    %3 = vector.broadcast %cst : f32 to vector<16x128xf32>
    %4 = arith.subf %3, %0 : vector<16x128xf32>
    %5 = math.log %4 : vector<16x128xf32>
    %cst_3 = arith.constant 1.000000e+00 : f32
    %6 = vector.broadcast %cst_3 : f32 to vector<16x128xf32>
    %7 = arith.subf %6, %0 : vector<16x128xf32>
    %8 = arith.mulf %7, %7 : vector<16x128xf32>
    %cst_4 = arith.constant 2.500000e-01 : f32
    %9 = vector.broadcast %cst_4 : f32 to vector<16x128xf32>
    %10 = arith.mulf %9, %1 : vector<16x128xf32>
    %cst_5 = arith.constant 0.000000e+00 : f32
    %11 = vector.broadcast %cst_5 : f32 to vector<16x128xf32>
    %12 = arith.subf %11, %8 : vector<16x128xf32>
    %13 = arith.mulf %2, %1 : vector<16x128xf32>
    %14 = arith.mulf %13, %10 : vector<16x128xf32>
    %cst_6 = arith.constant 1.000000e+00 : f32
    %15 = vector.broadcast %cst_6 : f32 to vector<16x128xf32>
    %16 = arith.subf %15, %1 : vector<16x128xf32>
    %17 = arith.mulf %5, %16 : vector<16x128xf32>
    %cst_7 = arith.constant 1.000000e+00 : f32
    %18 = vector.broadcast %cst_7 : f32 to vector<16x128xf32>
    %19 = arith.subf %18, %10 : vector<16x128xf32>
    %20 = arith.mulf %17, %19 : vector<16x128xf32>
    %21 = arith.addf %14, %20 : vector<16x128xf32>
    %22 = arith.mulf %12, %21 : vector<16x128xf32>
    %23 = vector.shape_cast %22 : vector<16x128xf32> to vector<2x8x128xf32>
    %cst_8 = arith.constant dense<0.000000e+00> : vector<8x128xf32>
    %24 = vector.multi_reduction <add>, %23, %cst_8 [0] : vector<2x8x128xf32> to vector<8x128xf32>
    %25 = vector.shape_cast %24 : vector<8x128xf32> to vector<1x8x128xf32>
    %c0_9 = arith.constant 0 : index
    %c0_10 = arith.constant 0 : index
    %c0_11 = arith.constant 0 : index
    %26 = vector.load %arg3[%c0_9, %c0_10, %c0_11] : memref<1x8x128xf32, #tpu.memory_space<vmem>>, vector<1x8x128xf32>
    tpu.vector_store %arg3[%c0_9, %c0_10, %c0_11], %25 {strides = array<i32>} : memref<1x8x128xf32, #tpu.memory_space<vmem>>, vector<1x8x128xf32>,
    return
  }
  func.func @transform_0(%arg0: i32) -> (i32, i32) {
    %c0_i32 = arith.constant 0 : i32
    %c0_i32_0 = arith.constant 0 : i32
    return %arg0, %c0_i32 : i32, i32
  }
  func.func @transform_1(%arg0: i32) -> (i32, i32) {
    %c0_i32 = arith.constant 0 : i32
    %c0_i32_0 = arith.constant 0 : i32
    return %arg0, %c0_i32 : i32, i32
  }
  func.func @transform_2(%arg0: i32) -> (i32, i32, i32) {
    %c0_i32 = arith.constant 0 : i32
    %c0_i32_0 = arith.constant 0 : i32
    %c0_i32_1 = arith.constant 0 : i32
    return %arg0, %c0_i32, %c0_i32_0 : i32, i32, i32
  }
}

</mosaic_0001>

<llo_original>
// kernel: tpu_custom_call.1
$region0: #{tpu_custom_call.1}
  #allocation0 [shape = 'u32[]', space=smem, size = 0x4, offset = 0x4, fixed_abs, tag = 'smem constant byte address 0x4 - core index']
  #allocation1 [shape = 'u32[144,128]{1,0:T(1,128)}', space=vmem, size = 0x12000, scoped, tag = 'internal scratch']
  %s0 = inlined_call_operand.hbm [shape: f32[16,128], index: 0, kind: input, shape index: {}]
  %s1 = inlined_call_operand.hbm [shape: f32[16,128], index: 1, kind: input, shape index: {}]
  %s2 = inlined_call_operand.hbm [shape: f32[1,8,128], index: 2, kind: output, shape index: {}]
  %s3 = sld [smem:[#allocation0]]
  $region26: #{tpu_custom_call.1} parent=0
    _
  %s5 = ssub.s32 1, %s3
  %s6 = scalar_select 0, %s5, %s3
  $region1: #{tpu_custom_call.1} parent=0
    #allocation2 [shape = 'u8[8192]{0}', space=vmem, size = 0x2000, scoped, tag = 'input window, operand 0, single buffered']
    #allocation3 [shape = 's32[1]{0}', space=sflag, size = 0x4, scoped, tag = 'scoped memory for tpu_custom_call.1']
    #allocation4 [shape = 's32[1]{0}', space=sflag, size = 0x4, scoped, tag = 'scoped memory for tpu_custom_call.1']
    #allocation5 [shape = 'u8[8192]{0}', space=vmem, size = 0x2000, scoped, tag = 'input window, operand 1, single buffered']
    #allocation6 [shape = 's32[1]{0}', space=sflag, size = 0x4, scoped, tag = 'scoped memory for tpu_custom_call.1']
    #allocation7 [shape = 'u8[4096]{0}', space=vmem, size = 0x1000, scoped, tag = 'output window, operand 0, single buffered']
    %7 = vsyncpa [#allocation3], 0
    %8 = vsyncpa [#allocation6], 0
    %9 = vsyncpa [#allocation4], 0
    // Predicated region
    $region2: #{tpu_custom_call.1} parent=1 // pred_check
      _
    $region3: #{tpu_custom_call.1} parent=1 // pred_check_branch
      %11 = sbr.rel (0) target = $region5
    $region4: #{tpu_custom_call.1} parent=1 // pred_region
      %s13 = ssub.s32 256, 256
      %14 = vsyncadd [#allocation3], %s13
      %s15 = sshll.u32 [#allocation2], 4
      %s16 = int_to_ptr.vmem [resolvable:$true] %s15
      %21 = dma.hbm_to_vmem [thread:$0]  %s0, 256, %s16, [#allocation3], 128, 128, 8
    $region5: #{tpu_custom_call.1} parent=1 // pred_fallthru
      _
    // Predicated region
    $region6: #{tpu_custom_call.1} parent=1 // pred_check
      _
    $region7: #{tpu_custom_call.1} parent=1 // pred_check_branch
      %23 = sbr.rel (0) target = $region9
    $region8: #{tpu_custom_call.1} parent=1 // pred_region
      %s25 = ssub.s32 256, 256
      %26 = vsyncadd [#allocation6], %s25
      %s27 = sshll.u32 [#allocation5], 4
      %s28 = int_to_ptr.vmem [resolvable:$true] %s27
      %33 = dma.hbm_to_vmem [thread:$0]  %s1, 256, %s28, [#allocation6], 128, 128, 8
    $region9: #{tpu_custom_call.1} parent=1 // pred_fallthru
      _
    // Predicated region
    $region10: #{tpu_custom_call.1} parent=1 // pred_check
      _
    $region11: #{tpu_custom_call.1} parent=1 // pred_check_branch
      %35 = sbr.rel (0) target = $region13
    $region12: #{tpu_custom_call.1} parent=1 // pred_region
      %36 = dma.done [#allocation3], 256
    $region13: #{tpu_custom_call.1} parent=1 // pred_fallthru
      _
    // Predicated region
    $region14: #{tpu_custom_call.1} parent=1 // pred_check
      _
    $region15: #{tpu_custom_call.1} parent=1 // pred_check_branch
      %38 = sbr.rel (0) target = $region17
    $region16: #{tpu_custom_call.1} parent=1 // pred_region
      %39 = dma.done [#allocation6], 256
    $region17: #{tpu_custom_call.1} parent=1 // pred_fallthru
      _
    %v40 = vld [vmem:[#allocation2] sm:$0xff]
    %v41 = vld [vmem:[#allocation2 + $0x8] sm:$0xff]
    %v42 = vld [vmem:[#allocation5] sm:$0xff]
    %v43 = vld [vmem:[#allocation5 + $0x8] sm:$0xff]
    %v44 = vlog2.pop %v40
    %v45 = vmul.f32 %v44, 0.6931472
    %v46 = vlog2.pop %v41
    %v47 = vmul.f32 %v46, 0.6931472
    %v48 = vsub.f32 1.0, %v40
    %v49 = vsub.f32 1.0, %v41
    %v50 = vlog2.pop %v48
    %v51 = vmul.f32 %v50, 0.6931472
    %v52 = vlog2.pop %v49
    %v53 = vmul.f32 %v52, 0.6931472
    %v54 = vmul.f32 %v48, %v48
    %v55 = vmul.f32 %v49, %v49
    %v56 = vmul.f32 %v42, 0.25
    %v57 = vmul.f32 %v43, 0.25
    %v58 = vsub.f32 0.0, %v54
    %v59 = vsub.f32 0.0, %v55
    %v60 = vmul.f32 %v45, %v42
    %v61 = vmul.f32 %v47, %v43
    %v62 = vmul.f32 %v60, %v56
    %v63 = vmul.f32 %v61, %v57
    %v64 = vsub.f32 1.0, %v42
    %v65 = vsub.f32 1.0, %v43
    %v66 = vmul.f32 %v51, %v64
    %v67 = vmul.f32 %v53, %v65
    %v68 = vsub.f32 1.0, %v56
    %v69 = vsub.f32 1.0, %v57
    %v70 = vmul.f32 %v66, %v68
    %v71 = vmul.f32 %v67, %v69
    %v72 = vadd.f32 %v62, %v70
    %v73 = vadd.f32 %v63, %v71
    %v74 = vmul.f32 %v58, %v72
    %v75 = vmul.f32 %v59, %v73
    %v76 = vadd.f32 %v74, %v75
    %77 = vst [vmem:[#allocation7] sm:$0xff] %v76
    // Predicated region
    $region18: #{tpu_custom_call.1} parent=1 // pred_check
      _
    $region19: #{tpu_custom_call.1} parent=1 // pred_check_branch
      %79 = sbr.rel (0) target = $region21
    $region20: #{tpu_custom_call.1} parent=1 // pred_region
      %s81 = ssub.s32 128, 128
      %82 = vsyncadd [#allocation4], %s81
      %s84 = sshll.u32 [#allocation7], 4
      %s85 = int_to_ptr.vmem [resolvable:$true] %s84
      %87 = dma.vmem_to_hbm [thread:$0]  %s85, 128, %s2, [#allocation4]
    $region21: #{tpu_custom_call.1} parent=1 // pred_fallthru
      _
    // Predicated region
    $region22: #{tpu_custom_call.1} parent=1 // pred_check
      _
    $region23: #{tpu_custom_call.1} parent=1 // pred_check_branch
      %89 = sbr.rel (0) target = $region25
    $region24: #{tpu_custom_call.1} parent=1 // pred_region
      %90 = dma.done [#allocation4], 128
    $region25: #{tpu_custom_call.1} parent=1 // pred_fallthru
      _
    %91 = vsyncpa [#allocation3], 1
    %92 = vsyncpa [#allocation6], 1
    %93 = vsyncpa [#allocation4], 1

</llo_original>
